<compile_context>
chip_gen: v7x
topology: tpu7x:2x2x1
jax: 0.10.0
libtpu: 0.0.40
codegen_flags: <defaults>
</compile_context>

<pallas_src>
import jax
import jax.numpy as jnp
from jax.experimental import pallas as pl
from jax.experimental.pallas import tpu as pltpu


def make_crossnet_kernel(layer_num: int):
    """Kernel body; the layer loop is statically unrolled (L is small)."""

    def crossnet_kernel(x_ref, w_ref, b_ref, o_ref):
        # x_ref/o_ref: (TB, D) batch tile (pipelined); w_ref/b_ref: (L, D) resident.
        w = w_ref[...].astype(jnp.float32)              # (L, D)
        b = b_ref[...].astype(jnp.float32)              # (L, D)

        # a[:, l] = <x0_row, w_l> for every layer at once: one MXU matmul.
        a = jax.lax.dot_general(
            x_ref[...].astype(jnp.float32), w,
            dimension_numbers=(((1,), (1,)), ((), ())),
            preferred_element_type=jnp.float32)          # (TB, L)

        # Affine-in-x0 recursion on cheap (TB,1)/(1,D) values.
        c = jnp.ones_like(a[:, 0:1])                     # (TB, 1) per-sample scale
        d = jnp.zeros_like(b[0:1, :])                    # (1, D)  shared offset
        for l in range(layer_num):
            e = jnp.sum(d * w[l:l + 1, :], axis=1, keepdims=True)   # (1, 1)
            c = c * (a[:, l:l + 1] + 1.0) + e
            d = d + b[l:l + 1, :]

        # Single full-tile FMA; re-read x_ref (already in VMEM) instead of
        # keeping a tile-sized x0 temporary alive across the recursion.
        out = c * x_ref[...].astype(jnp.float32) + d
        o_ref[...] = out.astype(o_ref.dtype)

    return crossnet_kernel


def crossnet_forward(x, kernels, biases, *, block_rows=None,
                     target_block_bytes=4 * 1024 * 1024,
                     vmem_limit_bytes=48 * 1024 * 1024):
    """x: (B, D); kernels/biases: (L, D) -> (B, D). Matches CrossNet.forward.

    Defaults are sized for v7x (64 MiB VMEM). On v5e/v6e (128 MiB VMEM, slower
    HBM) prefer target_block_bytes=8 MiB and vmem_limit_bytes=96 MiB.
    """
    B, D = x.shape
    L, Dw = kernels.shape
    assert Dw == D and biases.shape == (L, D)

    itemsize = jnp.dtype(x.dtype).itemsize
    # Dtype-aware sublane alignment: f32 -> 8, bf16 -> 16, int8/fp8 -> 32.
    align = 8 * max(1, 4 // itemsize)

    if block_rows is None:
        rows = max(align, target_block_bytes // max(D * itemsize, 1))
        block_rows = (rows // align) * align
    # Don't make the block larger than the (aligned) batch itself.
    b_align = ((B + align - 1) // align) * align
    block_rows = max(align, min(block_rows, b_align))
    assert block_rows % align == 0

    # No whole-array pad / slice: ragged last block is handled by Pallas
    # (OOB reads are garbage but rows are independent; OOB writes are masked).
    grid_b = pl.cdiv(B, block_rows)

    kernel = make_crossnet_kernel(L)
    out = pl.pallas_call(
        kernel,
        out_shape=jax.ShapeDtypeStruct((B, D), x.dtype),
        grid_spec=pltpu.PrefetchScalarGridSpec(
            num_scalar_prefetch=0,
            grid=(grid_b,),
            in_specs=[
                pl.BlockSpec((block_rows, D), lambda i: (i, 0)),
                pl.BlockSpec((L, D), lambda i: (0, 0)),   # resident params
                pl.BlockSpec((L, D), lambda i: (0, 0)),
            ],
            out_specs=pl.BlockSpec((block_rows, D), lambda i: (i, 0)),
        ),
        compiler_params=pltpu.CompilerParams(
            # Independent batch tiles; lets multi-TC chips shard the grid.
            dimension_semantics=("parallel",),
            vmem_limit_bytes=vmem_limit_bytes,
        ),
    )(x, kernels, biases)
    return out


def crossnet_ref(x, kernels, biases):
    """Pure-JAX reference mirroring the PyTorch forward exactly."""
    x0 = x[:, :, None]                                   # (B, D, 1)
    xl = x0
    for i in range(kernels.shape[0]):
        w = kernels[i][:, None]                          # (D, 1)
        xl_w = jnp.tensordot(xl, w, axes=([1], [0]))     # (B, 1, 1)
        dot_ = jnp.matmul(x0, xl_w)                      # (B, D, 1)
        xl = dot_ + biases[i][:, None] + xl
    return jnp.squeeze(xl, axis=2)


def _run_case(key, B, D, L, *, zero_bias, block_rows=None):
    kx, kw, kb = jax.random.split(key, 3)
    x = jax.random.normal(kx, (B, D), dtype=jnp.float32)
    xavier_std = (2.0 / (D + 1)) ** 0.5                  # xavier_normal_ for (D, 1)
    kernels = jax.random.normal(kw, (L, D), dtype=jnp.float32) * xavier_std
    if zero_bias:
        biases = jnp.zeros((L, D), dtype=jnp.float32)    # module's default init
    else:
        biases = jax.random.normal(kb, (L, D), dtype=jnp.float32) * 0.1
    out = jax.block_until_ready(
        crossnet_forward(x, kernels, biases, block_rows=block_rows))
    ref = crossnet_ref(x, kernels, biases)
    assert out.shape == (B, D)
    assert jnp.allclose(out, ref, atol=1e-4, rtol=1e-4), (
        f"mismatch B={B} D={D} L={L}: max_abs_err="
        f"{float(jnp.max(jnp.abs(out - ref)))}")


if __name__ == "__main__":
    key = jax.random.PRNGKey(0)
    k1, k2, k3 = jax.random.split(key, 3)

    # Case 1: narrow feature dim, default (zero) bias init -- matches module.
    _run_case(k1, B=8, D=32, L=2, zero_bias=True)

    # Case 2: wide feature dim, nonzero biases, L=3 exercises the affine path.
    _run_case(k2, B=16, D=128, L=3, zero_bias=False)

    # Case 3: ragged batch (B not a multiple of block_rows) with grid > 1.
    _run_case(k3, B=10, D=32, L=2, zero_bias=False, block_rows=8)

    print("KERNEL_OK")
</pallas_src>

<mosaic_0001>
module attributes {stable_mosaic.version = 11 : i64} {
  func.func @crossnet_kernel(%arg0: i32, %arg1: memref<8x32xf32, #tpu.memory_space<vmem>>, %arg2: memref<2x32xf32, #tpu.memory_space<vmem>>, %arg3: memref<2x32xf32, #tpu.memory_space<vmem>>, %arg4: memref<8x32xf32, #tpu.memory_space<vmem>>) attributes {dimension_semantics = [#tpu.dimension_semantics<parallel>], iteration_bounds = array<i64: 1>, scalar_prefetch = 0 : i64, scratch_operands = 0 : i64, tpu.core_type = #tpu.core_type<tc>, window_params = [{transform_indices = @transform_0, window_bounds = array<i64: 8, 32>}, {pipeline_mode = #tpu.pipeline_mode<synchronous>, transform_indices = @transform_1, window_bounds = array<i64: 2, 32>}, {pipeline_mode = #tpu.pipeline_mode<synchronous>, transform_indices = @transform_2, window_bounds = array<i64: 2, 32>}, {transform_indices = @transform_3, window_bounds = array<i64: 8, 32>}]} {
    %c0 = arith.constant 0 : index
    %c0_0 = arith.constant 0 : index
    %0 = vector.load %arg2[%c0, %c0_0] : memref<2x32xf32, #tpu.memory_space<vmem>>, vector<2x32xf32>
    %c0_1 = arith.constant 0 : index
    %c0_2 = arith.constant 0 : index
    %1 = vector.load %arg3[%c0_1, %c0_2] : memref<2x32xf32, #tpu.memory_space<vmem>>, vector<2x32xf32>
    %c0_3 = arith.constant 0 : index
    %c0_4 = arith.constant 0 : index
    %2 = vector.load %arg1[%c0_3, %c0_4] : memref<8x32xf32, #tpu.memory_space<vmem>>, vector<8x32xf32>
    %cst = arith.constant dense<0.000000e+00> : vector<8x2xf32>
    %3 = tpu.matmul %2, %0, %cst {dimension_numbers = #tpu.dot_dimension_numbers<[1], [1], [0], [0], [0, 0, 1, 0], [], []>} : vector<8x32xf32>, vector<2x32xf32>, vector<8x2xf32> -> vector<8x2xf32>
    %cst_5 = arith.constant 1.000000e+00 : f32
    %4 = vector.broadcast %cst_5 : f32 to vector<8x1xf32>
    %cst_6 = arith.constant 0.000000e+00 : f32
    %5 = vector.broadcast %cst_6 : f32 to vector<1x32xf32>
    %6 = vector.extract_strided_slice %0 {offsets = [0, 0], sizes = [1, 32], strides = [1, 1]} : vector<2x32xf32> to vector<1x32xf32>
    %7 = arith.mulf %5, %6 : vector<1x32xf32>
    %cst_7 = arith.constant dense<0.000000e+00> : vector<1xf32>
    %8 = vector.multi_reduction <add>, %7, %cst_7 [1] : vector<1x32xf32> to vector<1xf32>
    %9 = vector.shape_cast %8 : vector<1xf32> to vector<1x1xf32>
    %10 = vector.extract_strided_slice %3 {offsets = [0, 0], sizes = [8, 1], strides = [1, 1]} : vector<8x2xf32> to vector<8x1xf32>
    %cst_8 = arith.constant 1.000000e+00 : f32
    %11 = vector.broadcast %cst_8 : f32 to vector<8x1xf32>
    %12 = arith.addf %10, %11 : vector<8x1xf32>
    %13 = arith.mulf %4, %12 : vector<8x1xf32>
    %14 = vector.broadcast %9 : vector<1x1xf32> to vector<8x1xf32>
    %15 = arith.addf %13, %14 : vector<8x1xf32>
    %16 = vector.extract_strided_slice %1 {offsets = [0, 0], sizes = [1, 32], strides = [1, 1]} : vector<2x32xf32> to vector<1x32xf32>
    %17 = arith.addf %5, %16 : vector<1x32xf32>
    %18 = vector.extract_strided_slice %0 {offsets = [1, 0], sizes = [1, 32], strides = [1, 1]} : vector<2x32xf32> to vector<1x32xf32>
    %19 = arith.mulf %17, %18 : vector<1x32xf32>
    %cst_9 = arith.constant dense<0.000000e+00> : vector<1xf32>
    %20 = vector.multi_reduction <add>, %19, %cst_9 [1] : vector<1x32xf32> to vector<1xf32>
    %21 = vector.shape_cast %20 : vector<1xf32> to vector<1x1xf32>
    %22 = vector.extract_strided_slice %3 {offsets = [0, 1], sizes = [8, 1], strides = [1, 1]} : vector<8x2xf32> to vector<8x1xf32>
    %cst_10 = arith.constant 1.000000e+00 : f32
    %23 = vector.broadcast %cst_10 : f32 to vector<8x1xf32>
    %24 = arith.addf %22, %23 : vector<8x1xf32>
    %25 = arith.mulf %15, %24 : vector<8x1xf32>
    %26 = vector.broadcast %21 : vector<1x1xf32> to vector<8x1xf32>
    %27 = arith.addf %25, %26 : vector<8x1xf32>
    %28 = vector.extract_strided_slice %1 {offsets = [1, 0], sizes = [1, 32], strides = [1, 1]} : vector<2x32xf32> to vector<1x32xf32>
    %29 = arith.addf %17, %28 : vector<1x32xf32>
    %c0_11 = arith.constant 0 : index
    %c0_12 = arith.constant 0 : index
    %30 = vector.load %arg1[%c0_11, %c0_12] : memref<8x32xf32, #tpu.memory_space<vmem>>, vector<8x32xf32>
    %31 = vector.broadcast %27 : vector<8x1xf32> to vector<8x32xf32>
    %32 = arith.mulf %31, %30 : vector<8x32xf32>
    %33 = vector.broadcast %29 : vector<1x32xf32> to vector<8x32xf32>
    %34 = arith.addf %32, %33 : vector<8x32xf32>
    %c0_13 = arith.constant 0 : index
    %c0_14 = arith.constant 0 : index
    %35 = vector.load %arg4[%c0_13, %c0_14] : memref<8x32xf32, #tpu.memory_space<vmem>>, vector<8x32xf32>
    tpu.vector_store %arg4[%c0_13, %c0_14], %34 {strides = array<i32>} : memref<8x32xf32, #tpu.memory_space<vmem>>, vector<8x32xf32>,
    return
  }
  func.func @transform_0(%arg0: i32) -> (i32, i32) {
    %c0_i32 = arith.constant 0 : i32
    %c0_i32_0 = arith.constant 0 : i32
    return %arg0, %c0_i32 : i32, i32
  }
  func.func @transform_1(%arg0: i32) -> (i32, i32) {
    %c0_i32 = arith.constant 0 : i32
    %c0_i32_0 = arith.constant 0 : i32
    %c0_i32_1 = arith.constant 0 : i32
    return %c0_i32, %c0_i32_0 : i32, i32
  }
  func.func @transform_2(%arg0: i32) -> (i32, i32) {
    %c0_i32 = arith.constant 0 : i32
    %c0_i32_0 = arith.constant 0 : i32
    %c0_i32_1 = arith.constant 0 : i32
    return %c0_i32, %c0_i32_0 : i32, i32
  }
  func.func @transform_3(%arg0: i32) -> (i32, i32) {
    %c0_i32 = arith.constant 0 : i32
    %c0_i32_0 = arith.constant 0 : i32
    return %arg0, %c0_i32 : i32, i32
  }
}

</mosaic_0001>

<llo_original>
// kernel: tpu_custom_call.1
$region0: #{tpu_custom_call.1}
  #allocation0 [shape = 'u32[]', space=smem, size = 0x4, offset = 0x4, fixed_abs, tag = 'smem constant byte address 0x4 - core index']
  #allocation1 [shape = 'u32[144,128]{1,0:T(1,128)}', space=vmem, size = 0x12000, scoped, tag = 'internal scratch']
  %s0 = inlined_call_operand.hbm [shape: f32[8,32], index: 0, kind: input, shape index: {}]
  %s1 = inlined_call_operand.vmem [shape: f32[2,32], index: 1, kind: input, shape index: {}]
  %s2 = inlined_call_operand.vmem [shape: f32[2,32], index: 2, kind: input, shape index: {}]
  %s3 = inlined_call_operand.hbm [shape: f32[8,32], index: 3, kind: output, shape index: {}]
  %s4 = sld [smem:[#allocation0]]
  $region26: #{tpu_custom_call.1} parent=0
    _
  %s6 = ssub.s32 1, %s4
  %s7 = scalar_select 0, %s6, %s4
  $region1: #{tpu_custom_call.1} parent=0
    #allocation2 [shape = 'u8[4096]{0}', space=vmem, size = 0x1000, scoped, tag = 'input window, operand 0, single buffered']
    #allocation3 [shape = 's32[1]{0}', space=sflag, size = 0x4, scoped, tag = 'scoped memory for tpu_custom_call.1']
    #allocation4 [shape = 's32[1]{0}', space=sflag, size = 0x4, scoped, tag = 'scoped memory for tpu_custom_call.1']
    #allocation5 [shape = 'u8[4096]{0}', space=vmem, size = 0x1000, scoped, tag = 'output window, operand 0, single buffered']
    %8 = vsyncpa [#allocation3], 0
    %9 = vsyncpa [#allocation4], 0
    // Predicated region
    $region2: #{tpu_custom_call.1} parent=1 // pred_check
      _
    $region3: #{tpu_custom_call.1} parent=1 // pred_check_branch
      %11 = sbr.rel (0) target = $region5
    $region4: #{tpu_custom_call.1} parent=1 // pred_region
      %s13 = ssub.s32 128, 128
      %14 = vsyncadd [#allocation3], %s13
      %s16 = sshll.u32 [#allocation2], 4
      %s17 = int_to_ptr.vmem [resolvable:$true] %s16
      %19 = dma.hbm_to_vmem [thread:$0]  %s0, 128, %s17, [#allocation3]
    $region5: #{tpu_custom_call.1} parent=1 // pred_fallthru
      _
    // Predicated region
    $region6: #{tpu_custom_call.1} parent=1 // pred_check
      _
    $region7: #{tpu_custom_call.1} parent=1 // pred_check_branch
      %21 = sbr.rel (0) target = $region9
    $region8: #{tpu_custom_call.1} parent=1 // pred_region
      _
    $region9: #{tpu_custom_call.1} parent=1 // pred_fallthru
      _
    // Predicated region
    $region10: #{tpu_custom_call.1} parent=1 // pred_check
      _
    $region11: #{tpu_custom_call.1} parent=1 // pred_check_branch
      %23 = sbr.rel (0) target = $region13
    $region12: #{tpu_custom_call.1} parent=1 // pred_region
      _
    $region13: #{tpu_custom_call.1} parent=1 // pred_fallthru
      _
    // Predicated region
    $region14: #{tpu_custom_call.1} parent=1 // pred_check
      _
    $region15: #{tpu_custom_call.1} parent=1 // pred_check_branch
      %25 = sbr.rel (0) target = $region17
    $region16: #{tpu_custom_call.1} parent=1 // pred_region
      %26 = dma.done [#allocation3], 128
    $region17: #{tpu_custom_call.1} parent=1 // pred_fallthru
      _
    %v27 = vld [vmem:[%s1] sm:$0x3]
    %v28 = vld [vmem:[%s2] sm:$0x3]
    %v29 = vld [vmem:[#allocation2] sm:$0xff]
    %vm30 = vcmask 261120
    %v32 = vsel %vm30, %v29, 0
    %v35 = vsel %vm30, %v27, 0
    %37 = vmatprep.subr.mxu0 0.0
    %38 = vmatpush1.xpose.msra.mxu0 %v35
    %39 = vmatprep.subr.mxu0 0.0
    %40 = vmatpush1.xpose.msra.mxu0 0.0
    %41 = vmatprep.subr.mxu0 0.0
    %42 = vmatpush1.xpose.msra.mxu0 0.0
    %43 = vmatprep.subr.mxu0 0.0
    %44 = vmatpush1.xpose.msra.mxu0 0.0
    %45 = vmatprep.subr.mxu0 0.0
    %46 = vmatpush1.xpose.msra.mxu0 0.0
    %47 = vmatprep.subr.mxu0 0.0
    %48 = vmatpush1.xpose.msra.mxu0 0.0
    %49 = vmatprep.subr.mxu0 0.0
    %50 = vmatpush1.xpose.msra.mxu0 0.0
    %51 = vmatprep.subr.mxu0 0.0
    %52 = vmatpush1.xpose.msra.mxu0 0.0
    %53 = vmatprep.subr.mxu0 0.0
    %54 = vmatpush1.xpose.msra.mxu0 0.0
    %55 = vmatprep.subr.mxu0 0.0
    %56 = vmatpush1.xpose.msra.mxu0 0.0
    %57 = vmatprep.subr.mxu0 0.0
    %58 = vmatpush1.xpose.msra.mxu0 0.0
    %59 = vmatprep.subr.mxu0 0.0
    %60 = vmatpush1.xpose.msra.mxu0 0.0
    %61 = vmatprep.subr.mxu0 0.0
    %62 = vmatpush1.xpose.msra.mxu0 0.0
    %63 = vmatprep.subr.mxu0 0.0
    %64 = vmatpush1.xpose.msra.mxu0 0.0
    %65 = vmatprep.subr.mxu0 0.0
    %66 = vmatpush1.xpose.msra.mxu0 0.0
    %67 = vmatprep.subr.mxu0 0.0
    %68 = vmatpush1.xpose.msra.mxu0 0.0
    %69 = vmatprep.subr.mxu0 0.0
    %70 = vmatpush1.xpose.msra.mxu0 0.0
    %71 = vmatprep.subr.mxu0 0.0
    %72 = vmatpush1.xpose.msra.mxu0 0.0
    %73 = vmatprep.subr.mxu0 0.0
    %74 = vmatpush1.xpose.msra.mxu0 0.0
    %75 = vmatprep.subr.mxu0 0.0
    %76 = vmatpush1.xpose.msra.mxu0 0.0
    %77 = vmatprep.subr.mxu0 0.0
    %78 = vmatpush1.xpose.msra.mxu0 0.0
    %79 = vmatprep.subr.mxu0 0.0
    %80 = vmatpush1.xpose.msra.mxu0 0.0
    %81 = vmatprep.subr.mxu0 0.0
    %82 = vmatpush1.xpose.msra.mxu0 0.0
    %83 = vmatprep.subr.mxu0 0.0
    %84 = vmatpush1.xpose.msra.mxu0 0.0
    %85 = vmatprep.subr.mxu0 0.0
    %86 = vmatpush1.xpose.msra.mxu0 0.0
    %87 = vmatprep.subr.mxu0 0.0
    %88 = vmatpush1.xpose.msra.mxu0 0.0
    %89 = vmatprep.subr.mxu0 0.0
    %90 = vmatpush1.xpose.msra.mxu0 0.0
    %91 = vmatprep.subr.mxu0 0.0
    %92 = vmatpush1.xpose.msra.mxu0 0.0
    %93 = vmatprep.subr.mxu0 0.0
    %94 = vmatpush1.xpose.msra.mxu0 0.0
    %95 = vmatprep.subr.mxu0 0.0
    %96 = vmatpush1.xpose.msra.mxu0 0.0
    %97 = vmatprep.subr.mxu0 0.0
    %98 = vmatpush1.xpose.msra.mxu0 0.0
    %99 = vmatprep.subr.mxu0 0.0
    %100 = vmatpush1.xpose.msra.mxu0 0.0
    %101 = vmatprep.mubr.f32.mxu0 0.0
    %102 = vmatmul.mubr.f32.gmra.mrb[0].mxu0 %v32
    %v103 = vpop.f32.mrb[0].mxu0
    %v104 = vadd.f32 0.0, %v103
    %v105 = vpop.f32.mrb[0].mxu0
    %106 = vdwg.mxu0
    %v107 = vmul.f32 %v27, 0.0
    %vm108 = vcmask 253952
    %v109 = vsel %vm108, %v107, 0.0
    %110 = vadd.xlane.f32.xlu0 %v109
    %v111 = vpop.xlane.xlu0 %110
    %v112 = vadd.f32 %v104, 1.0
    %v113 = vlaneseq
    %v114 = vshrl.u32 %v113, 7
    %v115 = vsub.s32 0, %v114
    %v116 = vrot.slane %v111, %v115
    %v117 = vadd.f32 %v112, %v116
    %v118 = vadd.f32 %v28, 0.0
    %v119 = vrot.slane %v27, 1
    %v121 = vmul.f32 %v118, %v119
    %v122 = vsel %vm108, %v121, 0.0
    %123 = vadd.xlane.f32.xlu0 %v122
    %v124 = vpop.xlane.xlu0 %123
    %126 = vrot.lane.b32.xlu0 %v112, 127
    %v127 = vpop.permute.xlu0 %126
    %v129 = vmul.f32 %v117, %v127
    %v130 = vlaneseq
    %v131 = vshrl.u32 %v130, 7
    %v132 = vsub.s32 0, %v131
    %v133 = vrot.slane %v124, %v132
    %v134 = vadd.f32 %v129, %v133
    %v136 = vrot.slane %v28, 1
    %v138 = vadd.f32 %v118, %v136
    %140 = vset.pattern.permute.xlu0 0
    %141 = vperm.xlu0 %140, %v134
    %v142 = vpop.permute.xlu0 %141
    %v144 = vmul.f32 %v142, %v29
    %v145 = vlaneseq
    %v146 = vshrl.u32 %v145, 7
    %v147 = vsub.s32 0, %v146
    %v148 = vrot.slane %v138, %v147
    %v149 = vadd.f32 %v144, %v148
    %150 = vst.msk [vmem:[#allocation5] sm:$0xff] %vm30, %v149
    // Predicated region
    $region18: #{tpu_custom_call.1} parent=1 // pred_check
      _
    $region19: #{tpu_custom_call.1} parent=1 // pred_check_branch
      %152 = sbr.rel (0) target = $region21
    $region20: #{tpu_custom_call.1} parent=1 // pred_region
      %s154 = ssub.s32 128, 128
      %155 = vsyncadd [#allocation4], %s154
      %s157 = sshll.u32 [#allocation5], 4
      %s158 = int_to_ptr.vmem [resolvable:$true] %s157
      %160 = dma.vmem_to_hbm [thread:$0]  %s158, 128, %s3, [#allocation4]
    $region21: #{tpu_custom_call.1} parent=1 // pred_fallthru
      _
    // Predicated region
    $region22: #{tpu_custom_call.1} parent=1 // pred_check
      _
    $region23: #{tpu_custom_call.1} parent=1 // pred_check_branch
      %162 = sbr.rel (0) target = $region25
    $region24: #{tpu_custom_call.1} parent=1 // pred_region
      %163 = dma.done [#allocation4], 128
    $region25: #{tpu_custom_call.1} parent=1 // pred_fallthru
      _
    %164 = vsyncpa [#allocation3], 1
    %165 = vsyncpa [#allocation4], 1

</llo_original>
